<compile_context>
chip_gen: v5e
topology: v5e:2x2
jax: 0.10.0
libtpu: 0.0.40
codegen_flags: <defaults>
</compile_context>

<pallas_src>
import jax
import jax.numpy as jnp
from jax.experimental import pallas as pl
from jax.experimental.pallas import tpu as pltpu

# MLP: num_features -> 128 -> 128 -> 64 -> 64 -> 32 -> 10
LAYER_SIZES = [128, 128, 64, 64, 32, 10]
NUM_FEATURES = 784          # MNIST flattened 28*28
LANE = 128
SUBLANE = 16                # bf16 sublane packing minimum (rows)
KP = 896                    # 784 padded to a multiple of 128
HP = 128                    # every hidden/output width padded to 128
OUT_DIM = LAYER_SIZES[-1]   # 10


def _round_up(n, m):
    return (n + m - 1) // m * m


# --------------------------------------------------------------------------- #
# Kernel
# --------------------------------------------------------------------------- #
def dnn_kernel(x_ref, w1_ref, wpack_ref, bpack_ref, o_ref):
    """Fused 6-layer MLP on one [TM, KP] activation tile.

    x_ref:     [TM, 896]   bf16 activation tile
    w1_ref:    [896, 128]  bf16 first-layer weight (resident)
    wpack_ref: [5, 128, 128] bf16 packed weights for layers 2..6 (resident)
    bpack_ref: [8, 128]    f32 packed biases, rows 0..5 used (resident)
    o_ref:     [TM, 128]   f32 output tile (first 10 cols are real logits)
    """
    cdt = w1_ref.dtype
    h = x_ref[...]

    # Layer 1: 896 -> 128, ReLU
    y = jnp.dot(h, w1_ref[...], preferred_element_type=jnp.float32) + bpack_ref[0:1, :]
    h = jnp.maximum(y, 0.0).astype(cdt)

    # Layers 2..5: 128 -> 128 (zero-padded widths), ReLU
    for i in range(4):
        y = (jnp.dot(h, wpack_ref[i], preferred_element_type=jnp.float32)
             + bpack_ref[i + 1:i + 2, :])
        h = jnp.maximum(y, 0.0).astype(cdt)

    # Output layer: 128 -> 128 (10 real), no ReLU, f32 lane-dense store.
    o_ref[...] = (jnp.dot(h, wpack_ref[4], preferred_element_type=jnp.float32)
                  + bpack_ref[5:6, :])


# --------------------------------------------------------------------------- #
# One-time parameter preparation (hoisted out of the per-call path)
# --------------------------------------------------------------------------- #
def prepare_params(params, compute_dtype=jnp.bfloat16):
    """Pad + cast weights once. params: list of (W [in,out] f32, b [1,out] f32).

    Zero-padded rows/columns are numerically inert through Linear (+0 bias)
    and ReLU, so the padded network matches the original exactly (up to bf16).
    """
    w1, b1 = params[0]
    d_in, d_out = w1.shape
    w1p = jnp.zeros((KP, HP), compute_dtype).at[:d_in, :d_out].set(
        w1.astype(compute_dtype))

    n_rest = len(params) - 1
    wpack = jnp.zeros((n_rest, HP, HP), compute_dtype)
    bpack = jnp.zeros((8, HP), jnp.float32)
    bpack = bpack.at[0, :b1.shape[-1]].set(b1.reshape(-1).astype(jnp.float32))
    for i, (w, b) in enumerate(params[1:]):
        di, do = w.shape
        wpack = wpack.at[i, :di, :do].set(w.astype(compute_dtype))
        bpack = bpack.at[i + 1, :do].set(b.reshape(-1).astype(jnp.float32))
    return w1p, wpack, bpack


# --------------------------------------------------------------------------- #
# Batch tiling policy
# --------------------------------------------------------------------------- #
def _choose_tiling(batch, *, tm_max=512, min_grid_steps=2):
    """Returns (padded_batch, tm).

    Tiny batches: one tile padded only to the bf16 sublane minimum (16 rows).
    Larger batches: TM up to tm_max, but capped so the grid has >= 2 steps
    (shards across both TensorCores on v7x; no-op on v5e/v6e).
    """
    bp_min = _round_up(max(batch, SUBLANE), SUBLANE)
    if bp_min <= min_grid_steps * SUBLANE:
        return bp_min, bp_min                      # latency-bound: single tile
    tm = min(tm_max, _round_up(pl.cdiv(bp_min, min_grid_steps), SUBLANE))
    bp = _round_up(bp_min, tm)
    return bp, tm


# --------------------------------------------------------------------------- #
# Forward wrapper
# --------------------------------------------------------------------------- #
def dnn_forward(x, prepared, *, tm_max=512, compute_dtype=jnp.bfloat16):
    """x: [B, num_features] f32. prepared: output of prepare_params()."""
    w1p, wpack, bpack = prepared
    batch, feat = x.shape
    bp, tm = _choose_tiling(batch, tm_max=tm_max)
    grid = bp // tm

    # Zero-pad activations to a lane-dense [bp, KP] slab, cast to MXU dtype.
    xp = jnp.zeros((bp, KP), compute_dtype).at[:batch, :feat].set(
        x.astype(compute_dtype))

    n_hidden = wpack.shape[0]
    flops = 2 * bp * (KP * HP + n_hidden * HP * HP)
    bytes_accessed = (xp.size * xp.dtype.itemsize
                      + w1p.size * w1p.dtype.itemsize
                      + wpack.size * wpack.dtype.itemsize
                      + bpack.size * bpack.dtype.itemsize
                      + bp * HP * 4)

    out = pl.pallas_call(
        dnn_kernel,
        out_shape=jax.ShapeDtypeStruct((bp, HP), jnp.float32),
        grid_spec=pltpu.PrefetchScalarGridSpec(
            num_scalar_prefetch=0,
            grid=(grid,),
            in_specs=[
                # Activation tile: marches over the batch, double-buffered DMA.
                pl.BlockSpec((tm, KP), lambda i: (i, 0)),
                # Weights / biases: constant index maps -> resident in VMEM.
                pl.BlockSpec((KP, HP), lambda i: (0, 0)),
                pl.BlockSpec(wpack.shape, lambda i: (0, 0, 0)),
                pl.BlockSpec(bpack.shape, lambda i: (0, 0)),
            ],
            out_specs=pl.BlockSpec((tm, HP), lambda i: (i, 0)),
        ),
        compiler_params=pltpu.CompilerParams(
            dimension_semantics=("parallel",)),
        cost_estimate=pl.CostEstimate(
            flops=flops, transcendentals=0, bytes_accessed=bytes_accessed),
    )(xp, w1p, wpack, bpack)

    # Strip batch padding and the padded output columns (keep the real 10).
    return out[:batch, :OUT_DIM]


# --------------------------------------------------------------------------- #
# Init + pure-JAX reference
# --------------------------------------------------------------------------- #
def init_params(key, num_features):
    """Deterministic init matching nn.Linear shapes (stored transposed: [in, out])."""
    params = []
    in_dim = num_features
    for out_dim in LAYER_SIZES:
        key, kw, kb = jax.random.split(key, 3)
        bound = 1.0 / jnp.sqrt(jnp.float32(in_dim))
        w = jax.random.uniform(kw, (in_dim, out_dim), jnp.float32, -bound, bound)
        b = jax.random.uniform(kb, (1, out_dim), jnp.float32, -bound, bound)
        params.append((w, b))
        in_dim = out_dim
    return params


def reference_forward(x, params):
    """Pure-JAX f32 reference matching the PyTorch module."""
    h = x
    for i, (w, b) in enumerate(params):
        h = h @ w + b
        if i < len(params) - 1:
            h = jnp.maximum(h, 0.0)
    return h


if __name__ == "__main__":
    key = jax.random.PRNGKey(0)
    key, kx1, kx2 = jax.random.split(key, 3)
    params = init_params(key, NUM_FEATURES)

    # One-time parameter prep (padding + bf16 cast), hoisted out of the call path.
    prepared = jax.block_until_ready(prepare_params(params))

    # Small-batch (latency) path: batch=8 -> single 16-row tile.
    x_small = jax.random.normal(kx1, (8, NUM_FEATURES), jnp.float32)
    out_small = jax.block_until_ready(dnn_forward(x_small, prepared))
    ref_small = reference_forward(x_small, params)
    assert out_small.shape == (8, OUT_DIM), out_small.shape
    assert jnp.allclose(out_small, ref_small, atol=5e-2, rtol=5e-2), (
        "small-batch mismatch, max abs diff = "
        f"{float(jnp.max(jnp.abs(out_small - ref_small)))}")

    # Multi-step grid path: batch=384 -> 2 grid steps of TM=192 (exercises the
    # batch-parallel pipeline that feeds both TCs on v7x).
    x_big = jax.random.normal(kx2, (384, NUM_FEATURES), jnp.float32)
    out_big = jax.block_until_ready(dnn_forward(x_big, prepared))
    ref_big = reference_forward(x_big, params)
    assert out_big.shape == (384, OUT_DIM), out_big.shape
    assert jnp.allclose(out_big, ref_big, atol=5e-2, rtol=5e-2), (
        "large-batch mismatch, max abs diff = "
        f"{float(jnp.max(jnp.abs(out_big - ref_big)))}")

    print("KERNEL_OK")
</pallas_src>

<mosaic_0001>
module attributes {stable_mosaic.version = 11 : i64} {
  func.func @dnn_kernel(%arg0: i32, %arg1: memref<16x896xbf16, #tpu.memory_space<vmem>>, %arg2: memref<896x128xbf16, #tpu.memory_space<vmem>>, %arg3: memref<5x128x128xbf16, #tpu.memory_space<vmem>>, %arg4: memref<8x128xf32, #tpu.memory_space<vmem>>, %arg5: memref<16x128xf32, #tpu.memory_space<vmem>>) attributes {dimension_semantics = [#tpu.dimension_semantics<parallel>], iteration_bounds = array<i64: 1>, scalar_prefetch = 0 : i64, scratch_operands = 0 : i64, tpu.core_type = #tpu.core_type<tc>, window_params = [{transform_indices = @transform_0, window_bounds = array<i64: 16, 896>}, {pipeline_mode = #tpu.pipeline_mode<synchronous>, transform_indices = @transform_1, window_bounds = array<i64: 896, 128>}, {pipeline_mode = #tpu.pipeline_mode<synchronous>, transform_indices = @transform_2, window_bounds = array<i64: 5, 128, 128>}, {pipeline_mode = #tpu.pipeline_mode<synchronous>, transform_indices = @transform_3, window_bounds = array<i64: 8, 128>}, {transform_indices = @transform_4, window_bounds = array<i64: 16, 128>}]} {
    %c0 = arith.constant 0 : index
    %c0_0 = arith.constant 0 : index
    %0 = vector.load %arg1[%c0, %c0_0] : memref<16x896xbf16, #tpu.memory_space<vmem>>, vector<16x896xbf16>
    %c0_1 = arith.constant 0 : index
    %c0_2 = arith.constant 0 : index
    %1 = vector.load %arg2[%c0_1, %c0_2] : memref<896x128xbf16, #tpu.memory_space<vmem>>, vector<896x128xbf16>
    %cst = arith.constant dense<0.000000e+00> : vector<16x128xf32>
    %2 = tpu.matmul %0, %1, %cst {dimension_numbers = #tpu.dot_dimension_numbers<[1], [0], [0], [1], [0, 0, 1, 1], [], []>} : vector<16x896xbf16>, vector<896x128xbf16>, vector<16x128xf32> -> vector<16x128xf32>
    %c0_3 = arith.constant 0 : index
    %c0_4 = arith.constant 0 : index
    %3 = vector.load %arg4[%c0_3, %c0_4] : memref<8x128xf32, #tpu.memory_space<vmem>>, vector<1x128xf32>
    %4 = vector.broadcast %3 : vector<1x128xf32> to vector<16x128xf32>
    %5 = arith.addf %2, %4 : vector<16x128xf32>
    %cst_5 = arith.constant 0.000000e+00 : f32
    %6 = vector.broadcast %cst_5 : f32 to vector<16x128xf32>
    %7 = arith.maximumf %5, %6 : vector<16x128xf32>
    %8 = arith.truncf %7 : vector<16x128xf32> to vector<16x128xbf16>
    %c0_6 = arith.constant 0 : index
    %c0_7 = arith.constant 0 : index
    %c0_8 = arith.constant 0 : index
    %9 = vector.load %arg3[%c0_6, %c0_7, %c0_8] : memref<5x128x128xbf16, #tpu.memory_space<vmem>>, vector<1x128x128xbf16>
    %10 = vector.shape_cast %9 : vector<1x128x128xbf16> to vector<128x128xbf16>
    %cst_9 = arith.constant dense<0.000000e+00> : vector<16x128xf32>
    %11 = tpu.matmul %8, %10, %cst_9 {dimension_numbers = #tpu.dot_dimension_numbers<[1], [0], [0], [1], [0, 0, 1, 1], [], []>} : vector<16x128xbf16>, vector<128x128xbf16>, vector<16x128xf32> -> vector<16x128xf32>
    %c1 = arith.constant 1 : index
    %c0_10 = arith.constant 0 : index
    %12 = vector.load %arg4[%c1, %c0_10] : memref<8x128xf32, #tpu.memory_space<vmem>>, vector<1x128xf32>
    %13 = vector.broadcast %12 : vector<1x128xf32> to vector<16x128xf32>
    %14 = arith.addf %11, %13 : vector<16x128xf32>
    %cst_11 = arith.constant 0.000000e+00 : f32
    %15 = vector.broadcast %cst_11 : f32 to vector<16x128xf32>
    %16 = arith.maximumf %14, %15 : vector<16x128xf32>
    %17 = arith.truncf %16 : vector<16x128xf32> to vector<16x128xbf16>
    %c1_12 = arith.constant 1 : index
    %c0_13 = arith.constant 0 : index
    %c0_14 = arith.constant 0 : index
    %18 = vector.load %arg3[%c1_12, %c0_13, %c0_14] : memref<5x128x128xbf16, #tpu.memory_space<vmem>>, vector<1x128x128xbf16>
    %19 = vector.shape_cast %18 : vector<1x128x128xbf16> to vector<128x128xbf16>
    %cst_15 = arith.constant dense<0.000000e+00> : vector<16x128xf32>
    %20 = tpu.matmul %17, %19, %cst_15 {dimension_numbers = #tpu.dot_dimension_numbers<[1], [0], [0], [1], [0, 0, 1, 1], [], []>} : vector<16x128xbf16>, vector<128x128xbf16>, vector<16x128xf32> -> vector<16x128xf32>
    %c2 = arith.constant 2 : index
    %c0_16 = arith.constant 0 : index
    %21 = vector.load %arg4[%c2, %c0_16] : memref<8x128xf32, #tpu.memory_space<vmem>>, vector<1x128xf32>
    %22 = vector.broadcast %21 : vector<1x128xf32> to vector<16x128xf32>
    %23 = arith.addf %20, %22 : vector<16x128xf32>
    %cst_17 = arith.constant 0.000000e+00 : f32
    %24 = vector.broadcast %cst_17 : f32 to vector<16x128xf32>
    %25 = arith.maximumf %23, %24 : vector<16x128xf32>
    %26 = arith.truncf %25 : vector<16x128xf32> to vector<16x128xbf16>
    %c2_18 = arith.constant 2 : index
    %c0_19 = arith.constant 0 : index
    %c0_20 = arith.constant 0 : index
    %27 = vector.load %arg3[%c2_18, %c0_19, %c0_20] : memref<5x128x128xbf16, #tpu.memory_space<vmem>>, vector<1x128x128xbf16>
    %28 = vector.shape_cast %27 : vector<1x128x128xbf16> to vector<128x128xbf16>
    %cst_21 = arith.constant dense<0.000000e+00> : vector<16x128xf32>
    %29 = tpu.matmul %26, %28, %cst_21 {dimension_numbers = #tpu.dot_dimension_numbers<[1], [0], [0], [1], [0, 0, 1, 1], [], []>} : vector<16x128xbf16>, vector<128x128xbf16>, vector<16x128xf32> -> vector<16x128xf32>
    %c3 = arith.constant 3 : index
    %c0_22 = arith.constant 0 : index
    %30 = vector.load %arg4[%c3, %c0_22] : memref<8x128xf32, #tpu.memory_space<vmem>>, vector<1x128xf32>
    %31 = vector.broadcast %30 : vector<1x128xf32> to vector<16x128xf32>
    %32 = arith.addf %29, %31 : vector<16x128xf32>
    %cst_23 = arith.constant 0.000000e+00 : f32
    %33 = vector.broadcast %cst_23 : f32 to vector<16x128xf32>
    %34 = arith.maximumf %32, %33 : vector<16x128xf32>
    %35 = arith.truncf %34 : vector<16x128xf32> to vector<16x128xbf16>
    %c3_24 = arith.constant 3 : index
    %c0_25 = arith.constant 0 : index
    %c0_26 = arith.constant 0 : index
    %36 = vector.load %arg3[%c3_24, %c0_25, %c0_26] : memref<5x128x128xbf16, #tpu.memory_space<vmem>>, vector<1x128x128xbf16>
    %37 = vector.shape_cast %36 : vector<1x128x128xbf16> to vector<128x128xbf16>
    %cst_27 = arith.constant dense<0.000000e+00> : vector<16x128xf32>
    %38 = tpu.matmul %35, %37, %cst_27 {dimension_numbers = #tpu.dot_dimension_numbers<[1], [0], [0], [1], [0, 0, 1, 1], [], []>} : vector<16x128xbf16>, vector<128x128xbf16>, vector<16x128xf32> -> vector<16x128xf32>
    %c4 = arith.constant 4 : index
    %c0_28 = arith.constant 0 : index
    %39 = vector.load %arg4[%c4, %c0_28] : memref<8x128xf32, #tpu.memory_space<vmem>>, vector<1x128xf32>
    %40 = vector.broadcast %39 : vector<1x128xf32> to vector<16x128xf32>
    %41 = arith.addf %38, %40 : vector<16x128xf32>
    %cst_29 = arith.constant 0.000000e+00 : f32
    %42 = vector.broadcast %cst_29 : f32 to vector<16x128xf32>
    %43 = arith.maximumf %41, %42 : vector<16x128xf32>
    %44 = arith.truncf %43 : vector<16x128xf32> to vector<16x128xbf16>
    %c4_30 = arith.constant 4 : index
    %c0_31 = arith.constant 0 : index
    %c0_32 = arith.constant 0 : index
    %45 = vector.load %arg3[%c4_30, %c0_31, %c0_32] : memref<5x128x128xbf16, #tpu.memory_space<vmem>>, vector<1x128x128xbf16>
    %46 = vector.shape_cast %45 : vector<1x128x128xbf16> to vector<128x128xbf16>
    %cst_33 = arith.constant dense<0.000000e+00> : vector<16x128xf32>
    %47 = tpu.matmul %44, %46, %cst_33 {dimension_numbers = #tpu.dot_dimension_numbers<[1], [0], [0], [1], [0, 0, 1, 1], [], []>} : vector<16x128xbf16>, vector<128x128xbf16>, vector<16x128xf32> -> vector<16x128xf32>
    %c5 = arith.constant 5 : index
    %c0_34 = arith.constant 0 : index
    %48 = vector.load %arg4[%c5, %c0_34] : memref<8x128xf32, #tpu.memory_space<vmem>>, vector<1x128xf32>
    %49 = vector.broadcast %48 : vector<1x128xf32> to vector<16x128xf32>
    %50 = arith.addf %47, %49 : vector<16x128xf32>
    %c0_35 = arith.constant 0 : index
    %c0_36 = arith.constant 0 : index
    %51 = vector.load %arg5[%c0_35, %c0_36] : memref<16x128xf32, #tpu.memory_space<vmem>>, vector<16x128xf32>
    tpu.vector_store %arg5[%c0_35, %c0_36], %50 {strides = array<i32>} : memref<16x128xf32, #tpu.memory_space<vmem>>, vector<16x128xf32>,
    return
  }
  func.func @transform_0(%arg0: i32) -> (i32, i32) {
    %c0_i32 = arith.constant 0 : i32
    %c0_i32_0 = arith.constant 0 : i32
    return %arg0, %c0_i32 : i32, i32
  }
  func.func @transform_1(%arg0: i32) -> (i32, i32) {
    %c0_i32 = arith.constant 0 : i32
    %c0_i32_0 = arith.constant 0 : i32
    %c0_i32_1 = arith.constant 0 : i32
    return %c0_i32, %c0_i32_0 : i32, i32
  }
  func.func @transform_2(%arg0: i32) -> (i32, i32, i32) {
    %c0_i32 = arith.constant 0 : i32
    %c0_i32_0 = arith.constant 0 : i32
    %c0_i32_1 = arith.constant 0 : i32
    %c0_i32_2 = arith.constant 0 : i32
    return %c0_i32, %c0_i32_0, %c0_i32_1 : i32, i32, i32
  }
  func.func @transform_3(%arg0: i32) -> (i32, i32) {
    %c0_i32 = arith.constant 0 : i32
    %c0_i32_0 = arith.constant 0 : i32
    %c0_i32_1 = arith.constant 0 : i32
    return %c0_i32, %c0_i32_0 : i32, i32
  }
  func.func @transform_4(%arg0: i32) -> (i32, i32) {
    %c0_i32 = arith.constant 0 : i32
    %c0_i32_0 = arith.constant 0 : i32
    return %arg0, %c0_i32 : i32, i32
  }
}

</mosaic_0001>

<llo_original>
// kernel: tpu_custom_call.1
$region0: #{tpu_custom_call.1}
  #allocation0 [shape = 'u32[]', space=smem, size = 0x4, offset = 0x4, fixed_abs, tag = 'smem constant byte address 0x4 - core index']
  #allocation1 [shape = 'u32[72,128]{1,0:T(1,128)}', space=vmem, size = 0x9000, scoped, tag = 'internal scratch']
  %s0 = inlined_call_operand.hbm [shape: bf16[16,896], index: 0, kind: input, shape index: {}]
  %s1 = inlined_call_operand.hbm [shape: bf16[896,128], index: 1, kind: input, shape index: {}]
  %s2 = inlined_call_operand.hbm [shape: bf16[5,128,128], index: 2, kind: input, shape index: {}]
  %s3 = inlined_call_operand.hbm [shape: f32[8,128], index: 3, kind: input, shape index: {}]
  %s4 = inlined_call_operand.hbm [shape: f32[16,128], index: 4, kind: output, shape index: {}]
  %s5 = sld [smem:[#allocation0]]
  $region42: #{tpu_custom_call.1} parent=0
    _
  %s7 = ssub.s32 1, %s5
  %s8 = scalar_select 0, %s7, %s5
  $region1: #{tpu_custom_call.1} parent=0
    #allocation2 [shape = 'u8[28672]{0}', space=vmem, size = 0x7000, scoped, tag = 'input window, operand 0, single buffered']
    #allocation3 [shape = 's32[1]{0}', space=sflag, size = 0x4, scoped, tag = 'scoped memory for tpu_custom_call.1']
    #allocation4 [shape = 's32[1]{0}', space=sflag, size = 0x4, scoped, tag = 'scoped memory for tpu_custom_call.1']
    #allocation5 [shape = 'u8[229376]{0}', space=vmem, size = 0x38000, scoped, tag = 'input window, operand 1, single buffered']
    #allocation6 [shape = 's32[1]{0}', space=sflag, size = 0x4, scoped, tag = 'scoped memory for tpu_custom_call.1']
    #allocation7 [shape = 'u8[163840]{0}', space=vmem, size = 0x28000, scoped, tag = 'input window, operand 2, single buffered']
    #allocation8 [shape = 'u8[4096]{0}', space=vmem, size = 0x1000, scoped, tag = 'input window, operand 3, single buffered']
    #allocation9 [shape = 's32[1]{0}', space=sflag, size = 0x4, scoped, tag = 'scoped memory for tpu_custom_call.1']
    #allocation10 [shape = 'u8[8192]{0}', space=vmem, size = 0x2000, scoped, tag = 'output window, operand 0, single buffered']
    %9 = vsyncpa [#allocation3], 0
    %10 = vsyncpa [#allocation6], 0
    %11 = vsyncpa [#allocation9], 0
    %12 = vsyncpa [#allocation4], 0
    // Predicated region
    $region2: #{tpu_custom_call.1} parent=1 // pred_check
      _
    $region3: #{tpu_custom_call.1} parent=1 // pred_check_branch
      %14 = sbr.rel (0) target = $region5
    $region4: #{tpu_custom_call.1} parent=1 // pred_region
      %16 = vsyncadd [#allocation3], 0
      %s17 = sshll.u32 %s0, 4
      %s18 = int_to_ptr.hbm [resolvable:$true] %s17
      %s19 = sshll.u32 [#allocation2], 4
      %s20 = int_to_ptr.vmem [resolvable:$true] %s19
      %25 = dma.hbm_to_vmem [thread:$0]  %s18, 896, %s20, [#allocation3], 448, 448, 28
    $region5: #{tpu_custom_call.1} parent=1 // pred_fallthru
      _
    // Predicated region
    $region6: #{tpu_custom_call.1} parent=1 // pred_check
      _
    $region7: #{tpu_custom_call.1} parent=1 // pred_check_branch
      %27 = sbr.rel (0) target = $region9
    $region8: #{tpu_custom_call.1} parent=1 // pred_region
      %29 = vsyncadd [#allocation6], 0
      %s30 = sshll.u32 %s1, 4
      %s31 = int_to_ptr.hbm [resolvable:$true] %s30
      %s32 = sshll.u32 [#allocation5], 4
      %s33 = int_to_ptr.vmem [resolvable:$true] %s32
      %38 = dma.hbm_to_vmem [thread:$0]  %s31, 7168, %s33, [#allocation6], 64, 64, 4
    $region9: #{tpu_custom_call.1} parent=1 // pred_fallthru
      _
    // Predicated region
    $region10: #{tpu_custom_call.1} parent=1 // pred_check
      _
    $region11: #{tpu_custom_call.1} parent=1 // pred_check_branch
      %40 = sbr.rel (0) target = $region13
    $region12: #{tpu_custom_call.1} parent=1 // pred_region
      %42 = vsyncadd [#allocation6], 0
      %s43 = sshll.u32 %s2, 4
      %s44 = int_to_ptr.hbm [resolvable:$true] %s43
      %s45 = sshll.u32 [#allocation7], 4
      %s46 = int_to_ptr.vmem [resolvable:$true] %s45
      %51 = dma.hbm_to_vmem [thread:$0]  %s44, 5120, %s46, [#allocation6], 64, 64, 4
    $region13: #{tpu_custom_call.1} parent=1 // pred_fallthru
      _
    // Predicated region
    $region14: #{tpu_custom_call.1} parent=1 // pred_check
      _
    $region15: #{tpu_custom_call.1} parent=1 // pred_check_branch
      %53 = sbr.rel (0) target = $region17
    $region16: #{tpu_custom_call.1} parent=1 // pred_region
      %55 = vsyncadd [#allocation9], 0
      %s57 = sshll.u32 %s3, 4
      %s58 = int_to_ptr.hbm [resolvable:$true] %s57
      %s59 = sshll.u32 [#allocation8], 4
      %s60 = int_to_ptr.vmem [resolvable:$true] %s59
      %62 = dma.hbm_to_vmem [thread:$0]  %s58, 128, %s60, [#allocation9]
    $region17: #{tpu_custom_call.1} parent=1 // pred_fallthru
      _
    // Predicated region
    $region18: #{tpu_custom_call.1} parent=1 // pred_check
      _
    $region19: #{tpu_custom_call.1} parent=1 // pred_check_branch
      %64 = sbr.rel (0) target = $region21
    $region20: #{tpu_custom_call.1} parent=1 // pred_region
      %66 = dma.done [#allocation3], 896
    $region21: #{tpu_custom_call.1} parent=1 // pred_fallthru
      _
    // Predicated region
    $region22: #{tpu_custom_call.1} parent=1 // pred_check
      _
    $region23: #{tpu_custom_call.1} parent=1 // pred_check_branch
      %68 = sbr.rel (0) target = $region25
    $region24: #{tpu_custom_call.1} parent=1 // pred_region
      %70 = dma.done [#allocation6], 7168
    $region25: #{tpu_custom_call.1} parent=1 // pred_fallthru
      _
    // Predicated region
    $region26: #{tpu_custom_call.1} parent=1 // pred_check
      _
    $region27: #{tpu_custom_call.1} parent=1 // pred_check_branch
      %72 = sbr.rel (0) target = $region29
    $region28: #{tpu_custom_call.1} parent=1 // pred_region
      %74 = dma.done [#allocation6], 5120
    $region29: #{tpu_custom_call.1} parent=1 // pred_fallthru
      _
    // Predicated region
    $region30: #{tpu_custom_call.1} parent=1 // pred_check
      _
    $region31: #{tpu_custom_call.1} parent=1 // pred_check_branch
      %76 = sbr.rel (0) target = $region33
    $region32: #{tpu_custom_call.1} parent=1 // pred_region
      %78 = dma.done [#allocation9], 128
    $region33: #{tpu_custom_call.1} parent=1 // pred_fallthru
      _
    %v79 = vld [vmem:[#allocation2] sm:$0xff]
    %v80 = vld [vmem:[#allocation2 + $0x8] sm:$0xff]
    %v81 = vld [vmem:[#allocation2 + $0x10] sm:$0xff]
    %v82 = vld [vmem:[#allocation2 + $0x18] sm:$0xf]
    %v83 = vld [vmem:[#allocation2 + $0x1c] sm:$0xff]
    %v84 = vld [vmem:[#allocation2 + $0x24] sm:$0xff]
    %v85 = vld [vmem:[#allocation2 + $0x2c] sm:$0xff]
    %v86 = vld [vmem:[#allocation2 + $0x34] sm:$0xf]
    %v87 = vld [vmem:[#allocation5] sm:$0xf]
    %v88 = vld [vmem:[#allocation5 + $0x4] sm:$0xf]
    %v89 = vld [vmem:[#allocation5 + $0x8] sm:$0xf]
    %v90 = vld [vmem:[#allocation5 + $0xc] sm:$0xf]
    %v91 = vld [vmem:[#allocation5 + $0x10] sm:$0xf]
    %v92 = vld [vmem:[#allocation5 + $0x14] sm:$0xf]
    %v93 = vld [vmem:[#allocation5 + $0x18] sm:$0xf]
    %v94 = vld [vmem:[#allocation5 + $0x1c] sm:$0xf]
    %v95 = vld [vmem:[#allocation5 + $0x20] sm:$0xf]
    %v96 = vld [vmem:[#allocation5 + $0x24] sm:$0xf]
    %v97 = vld [vmem:[#allocation5 + $0x28] sm:$0xf]
    %v98 = vld [vmem:[#allocation5 + $0x2c] sm:$0xf]
    %v99 = vld [vmem:[#allocation5 + $0x30] sm:$0xf]
    %v100 = vld [vmem:[#allocation5 + $0x34] sm:$0xf]
    %v101 = vld [vmem:[#allocation5 + $0x38] sm:$0xf]
    %v102 = vld [vmem:[#allocation5 + $0x3c] sm:$0xf]
    %v103 = vld [vmem:[#allocation5 + $0x40] sm:$0xf]
    %v104 = vld [vmem:[#allocation5 + $0x44] sm:$0xf]
    %v105 = vld [vmem:[#allocation5 + $0x48] sm:$0xf]
    %v106 = vld [vmem:[#allocation5 + $0x4c] sm:$0xf]
    %v107 = vld [vmem:[#allocation5 + $0x50] sm:$0xf]
    %v108 = vld [vmem:[#allocation5 + $0x54] sm:$0xf]
    %v109 = vld [vmem:[#allocation5 + $0x58] sm:$0xf]
    %v110 = vld [vmem:[#allocation5 + $0x5c] sm:$0xf]
    %v111 = vld [vmem:[#allocation5 + $0x60] sm:$0xf]
    %v112 = vld [vmem:[#allocation5 + $0x64] sm:$0xf]
    %v113 = vld [vmem:[#allocation5 + $0x68] sm:$0xf]
    %v114 = vld [vmem:[#allocation5 + $0x6c] sm:$0xf]
    %v115 = vld [vmem:[#allocation5 + $0x70] sm:$0xf]
    %v116 = vld [vmem:[#allocation5 + $0x74] sm:$0xf]
    %v117 = vld [vmem:[#allocation5 + $0x78] sm:$0xf]
    %v118 = vld [vmem:[#allocation5 + $0x7c] sm:$0xf]
    %v119 = vld [vmem:[#allocation5 + $0x80] sm:$0xf]
    %v120 = vld [vmem:[#allocation5 + $0x84] sm:$0xf]
    %v121 = vld [vmem:[#allocation5 + $0x88] sm:$0xf]
    %v122 = vld [vmem:[#allocation5 + $0x8c] sm:$0xf]
    %v123 = vld [vmem:[#allocation5 + $0x90] sm:$0xf]
    %v124 = vld [vmem:[#allocation5 + $0x94] sm:$0xf]
    %v125 = vld [vmem:[#allocation5 + $0x98] sm:$0xf]
    %v126 = vld [vmem:[#allocation5 + $0x9c] sm:$0xf]
    %v127 = vld [vmem:[#allocation5 + $0xa0] sm:$0xf]
    %v128 = vld [vmem:[#allocation5 + $0xa4] sm:$0xf]
    %v129 = vld [vmem:[#allocation5 + $0xa8] sm:$0xf]
    %v130 = vld [vmem:[#allocation5 + $0xac] sm:$0xf]
    %v131 = vld [vmem:[#allocation5 + $0xb0] sm:$0xf]
    %v132 = vld [vmem:[#allocation5 + $0xb4] sm:$0xf]
    %v133 = vld [vmem:[#allocation5 + $0xb8] sm:$0xf]
    %v134 = vld [vmem:[#allocation5 + $0xbc] sm:$0xf]
    %v135 = vld [vmem:[#allocation5 + $0xc0] sm:$0xf]
    %v136 = vld [vmem:[#allocation5 + $0xc4] sm:$0xf]
    %v137 = vld [vmem:[#allocation5 + $0xc8] sm:$0xf]
    %v138 = vld [vmem:[#allocation5 + $0xcc] sm:$0xf]
    %v139 = vld [vmem:[#allocation5 + $0xd0] sm:$0xf]
    %v140 = vld [vmem:[#allocation5 + $0xd4] sm:$0xf]
    %v141 = vld [vmem:[#allocation5 + $0xd8] sm:$0xf]
    %v142 = vld [vmem:[#allocation5 + $0xdc] sm:$0xf]
    %v143 = vld [vmem:[#allocation5 + $0xe0] sm:$0xf]
    %v144 = vld [vmem:[#allocation5 + $0xe4] sm:$0xf]
    %v145 = vld [vmem:[#allocation5 + $0xe8] sm:$0xf]
    %v146 = vld [vmem:[#allocation5 + $0xec] sm:$0xf]
    %v147 = vld [vmem:[#allocation5 + $0xf0] sm:$0xf]
    %v148 = vld [vmem:[#allocation5 + $0xf4] sm:$0xf]
    %v149 = vld [vmem:[#allocation5 + $0xf8] sm:$0xf]
    %v150 = vld [vmem:[#allocation5 + $0xfc] sm:$0xf]
    %v151 = vld [vmem:[#allocation5 + $0x100] sm:$0xf]
    %v152 = vld [vmem:[#allocation5 + $0x104] sm:$0xf]
    %v153 = vld [vmem:[#allocation5 + $0x108] sm:$0xf]
    %v154 = vld [vmem:[#allocation5 + $0x10c] sm:$0xf]
    %v155 = vld [vmem:[#allocation5 + $0x110] sm:$0xf]
    %v156 = vld [vmem:[#allocation5 + $0x114] sm:$0xf]
    %v157 = vld [vmem:[#allocation5 + $0x118] sm:$0xf]
    %v158 = vld [vmem:[#allocation5 + $0x11c] sm:$0xf]
    %v159 = vld [vmem:[#allocation5 + $0x120] sm:$0xf]
    %v160 = vld [vmem:[#allocation5 + $0x124] sm:$0xf]
    %v161 = vld [vmem:[#allocation5 + $0x128] sm:$0xf]
    %v162 = vld [vmem:[#allocation5 + $0x12c] sm:$0xf]
    %v163 = vld [vmem:[#allocation5 + $0x130] sm:$0xf]
    %v164 = vld [vmem:[#allocation5 + $0x134] sm:$0xf]
    %v165 = vld [vmem:[#allocation5 + $0x138] sm:$0xf]
    %v166 = vld [vmem:[#allocation5 + $0x13c] sm:$0xf]
    %v167 = vld [vmem:[#allocation5 + $0x140] sm:$0xf]
    %v168 = vld [vmem:[#allocation5 + $0x144] sm:$0xf]
    %v169 = vld [vmem:[#allocation5 + $0x148] sm:$0xf]
    %v170 = vld [vmem:[#allocation5 + $0x14c] sm:$0xf]
    %v171 = vld [vmem:[#allocation5 + $0x150] sm:$0xf]
    %v172 = vld [vmem:[#allocation5 + $0x154] sm:$0xf]
    %v173 = vld [vmem:[#allocation5 + $0x158] sm:$0xf]
    %v174 = vld [vmem:[#allocation5 + $0x15c] sm:$0xf]
    %v175 = vld [vmem:[#allocation5 + $0x160] sm:$0xf]
    %v176 = vld [vmem:[#allocation5 + $0x164] sm:$0xf]
    %v177 = vld [vmem:[#allocation5 + $0x168] sm:$0xf]
    %v178 = vld [vmem:[#allocation5 + $0x16c] sm:$0xf]
    %v179 = vld [vmem:[#allocation5 + $0x170] sm:$0xf]
    %v180 = vld [vmem:[#allocation5 + $0x174] sm:$0xf]
    %v181 = vld [vmem:[#allocation5 + $0x178] sm:$0xf]
    %v182 = vld [vmem:[#allocation5 + $0x17c] sm:$0xf]
    %v183 = vld [vmem:[#allocation5 + $0x180] sm:$0xf]
    %v184 = vld [vmem:[#allocation5 + $0x184] sm:$0xf]
    %v185 = vld [vmem:[#allocation5 + $0x188] sm:$0xf]
    %v186 = vld [vmem:[#allocation5 + $0x18c] sm:$0xf]
    %v187 = vld [vmem:[#allocation5 + $0x190] sm:$0xf]
    %v188 = vld [vmem:[#allocation5 + $0x194] sm:$0xf]
    %v189 = vld [vmem:[#allocation5 + $0x198] sm:$0xf]
    %v190 = vld [vmem:[#allocation5 + $0x19c] sm:$0xf]
    %v191 = vld [vmem:[#allocation5 + $0x1a0] sm:$0xf]
    %v192 = vld [vmem:[#allocation5 + $0x1a4] sm:$0xf]
    %v193 = vld [vmem:[#allocation5 + $0x1a8] sm:$0xf]
    %v194 = vld [vmem:[#allocation5 + $0x1ac] sm:$0xf]
    %v195 = vld [vmem:[#allocation5 + $0x1b0] sm:$0xf]
    %v196 = vld [vmem:[#allocation5 + $0x1b4] sm:$0xf]
    %v197 = vld [vmem:[#allocation5 + $0x1b8] sm:$0xf]
    %v198 = vld [vmem:[#allocation5 + $0x1bc] sm:$0xf]
    %v199 = vld [vmem:[#allocation8] sm:$0x1]
    %v200 = vperm.slane %v199, 0
    %v209 = vunpack.c.l.b16 %v79
    %v210 = vunpack.c.h.b16 %v79
    %v211 = vunpack.c.l.b16 %v80
    %v212 = vunpack.c.h.b16 %v80
    %v213 = vunpack.c.l.b16 %v81
    %v214 = vunpack.c.h.b16 %v81
    %v215 = vunpack.c.l.b16 %v82
    %v216 = vunpack.c.l.b16 %v83
    %v217 = vunpack.c.h.b16 %v83
    %v218 = vunpack.c.l.b16 %v84
    %v219 = vunpack.c.h.b16 %v84
    %v220 = vunpack.c.l.b16 %v85
    %v221 = vunpack.c.h.b16 %v85
    %v222 = vunpack.c.l.b16 %v86
    %v223 = vpack.c.b16 %v216, %v209
    %v224 = vpack.c.b16 %v217, %v210
    %v225 = vpack.c.b16 %v218, %v211
    %v226 = vpack.c.b16 %v219, %v212
    %v227 = vpack.c.b16 %v220, %v213
    %v228 = vpack.c.b16 %v221, %v214
    %v229 = vpack.c.b16 %v222, %v215
    %v349 = vunpack.c.l.b16 %v87
    %v350 = vunpack.c.l.b16 %v88
    %v351 = vunpack.c.l.b16 %v89
    %v352 = vunpack.c.l.b16 %v90
    %v353 = vunpack.c.l.b16 %v91
    %v354 = vunpack.c.l.b16 %v92
    %v355 = vunpack.c.l.b16 %v93
    %v356 = vunpack.c.l.b16 %v94
    %v357 = vunpack.c.l.b16 %v95
    %v358 = vunpack.c.l.b16 %v96
    %v359 = vunpack.c.l.b16 %v97
    %v360 = vunpack.c.l.b16 %v98
    %v361 = vunpack.c.l.b16 %v99
    %v362 = vunpack.c.l.b16 %v100
    %v363 = vunpack.c.l.b16 %v101
    %v364 = vunpack.c.l.b16 %v102
    %v365 = vunpack.c.l.b16 %v103
    %v366 = vunpack.c.l.b16 %v104
    %v367 = vunpack.c.l.b16 %v105
    %v368 = vunpack.c.l.b16 %v106
    %v369 = vunpack.c.l.b16 %v107
    %v370 = vunpack.c.l.b16 %v108
    %v371 = vunpack.c.l.b16 %v109
    %v372 = vunpack.c.l.b16 %v110
    %v373 = vunpack.c.l.b16 %v111
    %v374 = vunpack.c.l.b16 %v112
    %v375 = vunpack.c.l.b16 %v113
    %v376 = vunpack.c.l.b16 %v114
    %v377 = vunpack.c.l.b16 %v115
    %v378 = vunpack.c.l.b16 %v116
    %v379 = vunpack.c.l.b16 %v117
    %v380 = vunpack.c.l.b16 %v118
    %v381 = vunpack.c.l.b16 %v119
    %v382 = vunpack.c.l.b16 %v120
    %v383 = vunpack.c.l.b16 %v121
    %v384 = vunpack.c.l.b16 %v122
    %v385 = vunpack.c.l.b16 %v123
    %v386 = vunpack.c.l.b16 %v124
    %v387 = vunpack.c.l.b16 %v125
    %v388 = vunpack.c.l.b16 %v126
    %v389 = vunpack.c.l.b16 %v127
    %v390 = vunpack.c.l.b16 %v128
    %v391 = vunpack.c.l.b16 %v129
    %v392 = vunpack.c.l.b16 %v130
    %v393 = vunpack.c.l.b16 %v131
    %v394 = vunpack.c.l.b16 %v132
    %v395 = vunpack.c.l.b16 %v133
    %v396 = vunpack.c.l.b16 %v134
    %v397 = vunpack.c.l.b16 %v135
    %v398 = vunpack.c.l.b16 %v136
    %v399 = vunpack.c.l.b16 %v137
    %v400 = vunpack.c.l.b16 %v138
    %v401 = vunpack.c.l.b16 %v139
    %v402 = vunpack.c.l.b16 %v140
    %v403 = vunpack.c.l.b16 %v141
    %v404 = vunpack.c.l.b16 %v142
    %v405 = vunpack.c.l.b16 %v143
    %v406 = vunpack.c.l.b16 %v144
    %v407 = vunpack.c.l.b16 %v145
    %v408 = vunpack.c.l.b16 %v146
    %v409 = vunpack.c.l.b16 %v147
    %v410 = vunpack.c.l.b16 %v148
    %v411 = vunpack.c.l.b16 %v149
    %v412 = vunpack.c.l.b16 %v150
    %v413 = vunpack.c.l.b16 %v151
    %v414 = vunpack.c.l.b16 %v152
    %v415 = vunpack.c.l.b16 %v153
    %v416 = vunpack.c.l.b16 %v154
    %v417 = vunpack.c.l.b16 %v155
    %v418 = vunpack.c.l.b16 %v156
    %v419 = vunpack.c.l.b16 %v157
    %v420 = vunpack.c.l.b16 %v158
    %v421 = vunpack.c.l.b16 %v159
    %v422 = vunpack.c.l.b16 %v160
    %v423 = vunpack.c.l.b16 %v161
    %v424 = vunpack.c.l.b16 %v162
    %v425 = vunpack.c.l.b16 %v163
    %v426 = vunpack.c.l.b16 %v164
    %v427 = vunpack.c.l.b16 %v165
    %v428 = vunpack.c.l.b16 %v166
    %v429 = vunpack.c.l.b16 %v167
    %v430 = vunpack.c.l.b16 %v168
    %v431 = vunpack.c.l.b16 %v169
    %v432 = vunpack.c.l.b16 %v170
    %v433 = vunpack.c.l.b16 %v171
    %v434 = vunpack.c.l.b16 %v172
    %v435 = vunpack.c.l.b16 %v173
    %v436 = vunpack.c.l.b16 %v174
    %v437 = vunpack.c.l.b16 %v175
    %v438 = vunpack.c.l.b16 %v176
    %v439 = vunpack.c.l.b16 %v177
    %v440 = vunpack.c.l.b16 %v178
    %v441 = vunpack.c.l.b16 %v179
    %v442 = vunpack.c.l.b16 %v180
    %v443 = vunpack.c.l.b16 %v181
    %v444 = vunpack.c.l.b16 %v182
    %v445 = vunpack.c.l.b16 %v183
    %v446 = vunpack.c.l.b16 %v184
    %v447 = vunpack.c.l.b16 %v185
    %v448 = vunpack.c.l.b16 %v186
    %v449 = vunpack.c.l.b16 %v187
    %v450 = vunpack.c.l.b16 %v188
    %v451 = vunpack.c.l.b16 %v189
    %v452 = vunpack.c.l.b16 %v190
    %v453 = vunpack.c.l.b16 %v191
    %v454 = vunpack.c.l.b16 %v192
    %v455 = vunpack.c.l.b16 %v193
    %v456 = vunpack.c.l.b16 %v194
    %v457 = vunpack.c.l.b16 %v195
    %v458 = vunpack.c.l.b16 %v196
    %v459 = vunpack.c.l.b16 %v197
    %v460 = vunpack.c.l.b16 %v198
    %v461 = vpack.c.b16 %v350, %v349
    %v462 = vpack.c.b16 %v352, %v351
    %v463 = vpack.c.b16 %v354, %v353
    %v464 = vpack.c.b16 %v356, %v355
    %v465 = vpack.c.b16 %v358, %v357
    %v466 = vpack.c.b16 %v360, %v359
    %v467 = vpack.c.b16 %v362, %v361
    %v468 = vpack.c.b16 %v364, %v363
    %v469 = vpack.c.b16 %v366, %v365
    %v470 = vpack.c.b16 %v368, %v367
    %v471 = vpack.c.b16 %v370, %v369
    %v472 = vpack.c.b16 %v372, %v371
    %v473 = vpack.c.b16 %v374, %v373
    %v474 = vpack.c.b16 %v376, %v375
    %v475 = vpack.c.b16 %v378, %v377
    %v476 = vpack.c.b16 %v380, %v379
    %v477 = vpack.c.b16 %v382, %v381
    %v478 = vpack.c.b16 %v384, %v383
    %v479 = vpack.c.b16 %v386, %v385
    %v480 = vpack.c.b16 %v388, %v387
    %v481 = vpack.c.b16 %v390, %v389
    %v482 = vpack.c.b16 %v392, %v391
    %v483 = vpack.c.b16 %v394, %v393
    %v484 = vpack.c.b16 %v396, %v395
    %v485 = vpack.c.b16 %v398, %v397
    %v486 = vpack.c.b16 %v400, %v399
    %v487 = vpack.c.b16 %v402, %v401
    %v488 = vpack.c.b16 %v404, %v403
    %v489 = vpack.c.b16 %v406, %v405
    %v490 = vpack.c.b16 %v408, %v407
    %v491 = vpack.c.b16 %v410, %v409
    %v492 = vpack.c.b16 %v412, %v411
    %v493 = vpack.c.b16 %v414, %v413
    %v494 = vpack.c.b16 %v416, %v415
    %v495 = vpack.c.b16 %v418, %v417
    %v496 = vpack.c.b16 %v420, %v419
    %v497 = vpack.c.b16 %v422, %v421
    %v498 = vpack.c.b16 %v424, %v423
    %v499 = vpack.c.b16 %v426, %v425
    %v500 = vpack.c.b16 %v428, %v427
    %v501 = vpack.c.b16 %v430, %v429
    %v502 = vpack.c.b16 %v432, %v431
    %v503 = vpack.c.b16 %v434, %v433
    %v504 = vpack.c.b16 %v436, %v435
    %v505 = vpack.c.b16 %v438, %v437
    %v506 = vpack.c.b16 %v440, %v439
    %v507 = vpack.c.b16 %v442, %v441
    %v508 = vpack.c.b16 %v444, %v443
    %v509 = vpack.c.b16 %v446, %v445
    %v510 = vpack.c.b16 %v448, %v447
    %v511 = vpack.c.b16 %v450, %v449
    %v512 = vpack.c.b16 %v452, %v451
    %v513 = vpack.c.b16 %v454, %v453
    %v514 = vpack.c.b16 %v456, %v455
    %v515 = vpack.c.b16 %v458, %v457
    %v516 = vpack.c.b16 %v460, %v459
    %573 = vmatpush.bf16.msra.mxu0 %v468
    %574 = vmatpush.bf16.msra.mxu0 %v467
    %575 = vmatpush.bf16.msra.mxu0 %v466
    %576 = vmatpush.bf16.msra.mxu0 %v465
    %577 = vmatpush.bf16.msra.mxu0 %v464
    %578 = vmatpush.bf16.msra.mxu0 %v463
    %579 = vmatpush.bf16.msra.mxu0 %v462
    %580 = vmatpush.bf16.msra.mxu0 %v461
    %581 = vmatmul.bf16.gmra.mxu0 %v223
    %v582 = vpop.f32.mrf.mxu0
    %v583 = vadd.f32 %v200, %v582
    %v584 = vpop.f32.mrf.mxu0
    %v585 = vadd.f32 %v200, %v584
    %586 = vdwg.mxu0
    %587 = vmatpush.bf16.msra.mxu0 %v476
    %588 = vmatpush.bf16.msra.mxu0 %v475
    %589 = vmatpush.bf16.msra.mxu0 %v474
    %590 = vmatpush.bf16.msra.mxu0 %v473
    %591 = vmatpush.bf16.msra.mxu0 %v472
    %592 = vmatpush.bf16.msra.mxu0 %v471
    %593 = vmatpush.bf16.msra.mxu0 %v470
    %594 = vmatpush.bf16.msra.mxu0 %v469
    %595 = vmatmul.bf16.gmra.mxu0 %v224
    %v596 = vpop.f32.mrf.mxu0
    %v597 = vadd.f32 %v583, %v596
    %v598 = vpop.f32.mrf.mxu0
    %v599 = vadd.f32 %v585, %v598
    %600 = vdwg.mxu0
    %601 = vmatpush.bf16.msra.mxu0 %v484
    %602 = vmatpush.bf16.msra.mxu0 %v483
    %603 = vmatpush.bf16.msra.mxu0 %v482
    %604 = vmatpush.bf16.msra.mxu0 %v481
    %605 = vmatpush.bf16.msra.mxu0 %v480
    %606 = vmatpush.bf16.msra.mxu0 %v479
    %607 = vmatpush.bf16.msra.mxu0 %v478
    %608 = vmatpush.bf16.msra.mxu0 %v477
    %609 = vmatmul.bf16.gmra.mxu0 %v225
    %v610 = vpop.f32.mrf.mxu0
    %v611 = vadd.f32 %v597, %v610
    %v612 = vpop.f32.mrf.mxu0
    %v613 = vadd.f32 %v599, %v612
    %614 = vdwg.mxu0
    %615 = vmatpush.bf16.msra.mxu0 %v492
    %616 = vmatpush.bf16.msra.mxu0 %v491
    %617 = vmatpush.bf16.msra.mxu0 %v490
    %618 = vmatpush.bf16.msra.mxu0 %v489
    %619 = vmatpush.bf16.msra.mxu0 %v488
    %620 = vmatpush.bf16.msra.mxu0 %v487
    %621 = vmatpush.bf16.msra.mxu0 %v486
    %622 = vmatpush.bf16.msra.mxu0 %v485
    %623 = vmatmul.bf16.gmra.mxu0 %v226
    %v624 = vpop.f32.mrf.mxu0
    %v625 = vadd.f32 %v611, %v624
    %v626 = vpop.f32.mrf.mxu0
    %v627 = vadd.f32 %v613, %v626
    %628 = vdwg.mxu0
    %629 = vmatpush.bf16.msra.mxu0 %v500
    %630 = vmatpush.bf16.msra.mxu0 %v499
    %631 = vmatpush.bf16.msra.mxu0 %v498
    %632 = vmatpush.bf16.msra.mxu0 %v497
    %633 = vmatpush.bf16.msra.mxu0 %v496
    %634 = vmatpush.bf16.msra.mxu0 %v495
    %635 = vmatpush.bf16.msra.mxu0 %v494
    %636 = vmatpush.bf16.msra.mxu0 %v493
    %637 = vmatmul.bf16.gmra.mxu0 %v227
    %v638 = vpop.f32.mrf.mxu0
    %v639 = vadd.f32 %v625, %v638
    %v640 = vpop.f32.mrf.mxu0
    %v641 = vadd.f32 %v627, %v640
    %642 = vdwg.mxu0
    %643 = vmatpush.bf16.msra.mxu0 %v508
    %644 = vmatpush.bf16.msra.mxu0 %v507
    %645 = vmatpush.bf16.msra.mxu0 %v506
    %646 = vmatpush.bf16.msra.mxu0 %v505
    %647 = vmatpush.bf16.msra.mxu0 %v504
    %648 = vmatpush.bf16.msra.mxu0 %v503
    %649 = vmatpush.bf16.msra.mxu0 %v502
    %650 = vmatpush.bf16.msra.mxu0 %v501
    %651 = vmatmul.bf16.gmra.mxu0 %v228
    %v652 = vpop.f32.mrf.mxu0
    %v653 = vadd.f32 %v639, %v652
    %v654 = vpop.f32.mrf.mxu0
    %v655 = vadd.f32 %v641, %v654
    %656 = vdwg.mxu0
    %657 = vmatpush.bf16.msra.mxu0 %v516
    %658 = vmatpush.bf16.msra.mxu0 %v515
    %659 = vmatpush.bf16.msra.mxu0 %v514
    %660 = vmatpush.bf16.msra.mxu0 %v513
    %661 = vmatpush.bf16.msra.mxu0 %v512
    %662 = vmatpush.bf16.msra.mxu0 %v511
    %663 = vmatpush.bf16.msra.mxu0 %v510
    %664 = vmatpush.bf16.msra.mxu0 %v509
    %665 = vmatmul.bf16.gmra.mxu0 %v229
    %v666 = vpop.f32.mrf.mxu0
    %v667 = vadd.f32 %v653, %v666
    %v668 = vpop.f32.mrf.mxu0
    %v669 = vadd.f32 %v655, %v668
    %670 = vdwg.mxu0
    %v671 = vmax.f32 %v667, 0.0
    %v672 = vmax.f32 %v669, 0.0
    %v673 = vpack.c.bf16 %v672, %v671
    %v674 = vld [vmem:[#allocation7] sm:$0xf]
    %v675 = vld [vmem:[#allocation7 + $0x4] sm:$0xf]
    %v676 = vld [vmem:[#allocation7 + $0x8] sm:$0xf]
    %v677 = vld [vmem:[#allocation7 + $0xc] sm:$0xf]
    %v678 = vld [vmem:[#allocation7 + $0x10] sm:$0xf]
    %v679 = vld [vmem:[#allocation7 + $0x14] sm:$0xf]
    %v680 = vld [vmem:[#allocation7 + $0x18] sm:$0xf]
    %v681 = vld [vmem:[#allocation7 + $0x1c] sm:$0xf]
    %v682 = vld [vmem:[#allocation7 + $0x20] sm:$0xf]
    %v683 = vld [vmem:[#allocation7 + $0x24] sm:$0xf]
    %v684 = vld [vmem:[#allocation7 + $0x28] sm:$0xf]
    %v685 = vld [vmem:[#allocation7 + $0x2c] sm:$0xf]
    %v686 = vld [vmem:[#allocation7 + $0x30] sm:$0xf]
    %v687 = vld [vmem:[#allocation7 + $0x34] sm:$0xf]
    %v688 = vld [vmem:[#allocation7 + $0x38] sm:$0xf]
    %v689 = vld [vmem:[#allocation7 + $0x3c] sm:$0xf]
    %v690 = vld [vmem:[#allocation8 + $0x1] sm:$0x1]
    %v691 = vperm.slane %v690, 0
    %v708 = vunpack.c.l.b16 %v674
    %v709 = vunpack.c.l.b16 %v675
    %v710 = vunpack.c.l.b16 %v676
    %v711 = vunpack.c.l.b16 %v677
    %v712 = vunpack.c.l.b16 %v678
    %v713 = vunpack.c.l.b16 %v679
    %v714 = vunpack.c.l.b16 %v680
    %v715 = vunpack.c.l.b16 %v681
    %v716 = vunpack.c.l.b16 %v682
    %v717 = vunpack.c.l.b16 %v683
    %v718 = vunpack.c.l.b16 %v684
    %v719 = vunpack.c.l.b16 %v685
    %v720 = vunpack.c.l.b16 %v686
    %v721 = vunpack.c.l.b16 %v687
    %v722 = vunpack.c.l.b16 %v688
    %v723 = vunpack.c.l.b16 %v689
    %v724 = vpack.c.b16 %v709, %v708
    %v725 = vpack.c.b16 %v711, %v710
    %v726 = vpack.c.b16 %v713, %v712
    %v727 = vpack.c.b16 %v715, %v714
    %v728 = vpack.c.b16 %v717, %v716
    %v729 = vpack.c.b16 %v719, %v718
    %v730 = vpack.c.b16 %v721, %v720
    %v731 = vpack.c.b16 %v723, %v722
    %740 = vmatpush.bf16.msra.mxu0 %v731
    %741 = vmatpush.bf16.msra.mxu0 %v730
    %742 = vmatpush.bf16.msra.mxu0 %v729
    %743 = vmatpush.bf16.msra.mxu0 %v728
    %744 = vmatpush.bf16.msra.mxu0 %v727
    %745 = vmatpush.bf16.msra.mxu0 %v726
    %746 = vmatpush.bf16.msra.mxu0 %v725
    %747 = vmatpush.bf16.msra.mxu0 %v724
    %748 = vmatmul.bf16.gmra.mxu0 %v673
    %v749 = vpop.f32.mrf.mxu0
    %v750 = vadd.f32 %v691, %v749
    %v751 = vpop.f32.mrf.mxu0
    %v752 = vadd.f32 %v691, %v751
    %753 = vdwg.mxu0
    %v754 = vmax.f32 %v750, 0.0
    %v755 = vmax.f32 %v752, 0.0
    %v756 = vpack.c.bf16 %v755, %v754
    %s757 = scalar_lea.vmem [#allocation7], 64
    %v758 = vld [vmem:[%s757] sm:$0xf]
    %v759 = vld [vmem:[%s757 + $0x4] sm:$0xf]
    %v760 = vld [vmem:[%s757 + $0x8] sm:$0xf]
    %v761 = vld [vmem:[%s757 + $0xc] sm:$0xf]
    %v762 = vld [vmem:[%s757 + $0x10] sm:$0xf]
    %v763 = vld [vmem:[%s757 + $0x14] sm:$0xf]
    %v764 = vld [vmem:[%s757 + $0x18] sm:$0xf]
    %v765 = vld [vmem:[%s757 + $0x1c] sm:$0xf]
    %v766 = vld [vmem:[%s757 + $0x20] sm:$0xf]
    %v767 = vld [vmem:[%s757 + $0x24] sm:$0xf]
    %v768 = vld [vmem:[%s757 + $0x28] sm:$0xf]
    %v769 = vld [vmem:[%s757 + $0x2c] sm:$0xf]
    %v770 = vld [vmem:[%s757 + $0x30] sm:$0xf]
    %v771 = vld [vmem:[%s757 + $0x34] sm:$0xf]
    %v772 = vld [vmem:[%s757 + $0x38] sm:$0xf]
    %v773 = vld [vmem:[%s757 + $0x3c] sm:$0xf]
    %v774 = vld [vmem:[#allocation8 + $0x2] sm:$0x1]
    %v775 = vperm.slane %v774, 0
    %v792 = vunpack.c.l.b16 %v758
    %v793 = vunpack.c.l.b16 %v759
    %v794 = vunpack.c.l.b16 %v760
    %v795 = vunpack.c.l.b16 %v761
    %v796 = vunpack.c.l.b16 %v762
    %v797 = vunpack.c.l.b16 %v763
    %v798 = vunpack.c.l.b16 %v764
    %v799 = vunpack.c.l.b16 %v765
    %v800 = vunpack.c.l.b16 %v766
    %v801 = vunpack.c.l.b16 %v767
    %v802 = vunpack.c.l.b16 %v768
    %v803 = vunpack.c.l.b16 %v769
    %v804 = vunpack.c.l.b16 %v770
    %v805 = vunpack.c.l.b16 %v771
    %v806 = vunpack.c.l.b16 %v772
    %v807 = vunpack.c.l.b16 %v773
    %v808 = vpack.c.b16 %v793, %v792
    %v809 = vpack.c.b16 %v795, %v794
    %v810 = vpack.c.b16 %v797, %v796
    %v811 = vpack.c.b16 %v799, %v798
    %v812 = vpack.c.b16 %v801, %v800
    %v813 = vpack.c.b16 %v803, %v802
    %v814 = vpack.c.b16 %v805, %v804
    %v815 = vpack.c.b16 %v807, %v806
    %824 = vmatpush.bf16.msra.mxu0 %v815
    %825 = vmatpush.bf16.msra.mxu0 %v814
    %826 = vmatpush.bf16.msra.mxu0 %v813
    %827 = vmatpush.bf16.msra.mxu0 %v812
    %828 = vmatpush.bf16.msra.mxu0 %v811
    %829 = vmatpush.bf16.msra.mxu0 %v810
    %830 = vmatpush.bf16.msra.mxu0 %v809
    %831 = vmatpush.bf16.msra.mxu0 %v808
    %832 = vmatmul.bf16.gmra.mxu0 %v756
    %v833 = vpop.f32.mrf.mxu0
    %v834 = vadd.f32 %v775, %v833
    %v835 = vpop.f32.mrf.mxu0
    %v836 = vadd.f32 %v775, %v835
    %837 = vdwg.mxu0
    %v838 = vmax.f32 %v834, 0.0
    %v839 = vmax.f32 %v836, 0.0
    %v840 = vpack.c.bf16 %v839, %v838
    %s841 = scalar_lea.vmem [#allocation7], 128
    %v842 = vld [vmem:[%s841] sm:$0xf]
    %v843 = vld [vmem:[%s841 + $0x4] sm:$0xf]
    %v844 = vld [vmem:[%s841 + $0x8] sm:$0xf]
    %v845 = vld [vmem:[%s841 + $0xc] sm:$0xf]
    %v846 = vld [vmem:[%s841 + $0x10] sm:$0xf]
    %v847 = vld [vmem:[%s841 + $0x14] sm:$0xf]
    %v848 = vld [vmem:[%s841 + $0x18] sm:$0xf]
    %v849 = vld [vmem:[%s841 + $0x1c] sm:$0xf]
    %v850 = vld [vmem:[%s841 + $0x20] sm:$0xf]
    %v851 = vld [vmem:[%s841 + $0x24] sm:$0xf]
    %v852 = vld [vmem:[%s841 + $0x28] sm:$0xf]
    %v853 = vld [vmem:[%s841 + $0x2c] sm:$0xf]
    %v854 = vld [vmem:[%s841 + $0x30] sm:$0xf]
    %v855 = vld [vmem:[%s841 + $0x34] sm:$0xf]
    %v856 = vld [vmem:[%s841 + $0x38] sm:$0xf]
    %v857 = vld [vmem:[%s841 + $0x3c] sm:$0xf]
    %v858 = vld [vmem:[#allocation8 + $0x3] sm:$0x1]
    %v859 = vperm.slane %v858, 0
    %v876 = vunpack.c.l.b16 %v842
    %v877 = vunpack.c.l.b16 %v843
    %v878 = vunpack.c.l.b16 %v844
    %v879 = vunpack.c.l.b16 %v845
    %v880 = vunpack.c.l.b16 %v846
    %v881 = vunpack.c.l.b16 %v847
    %v882 = vunpack.c.l.b16 %v848
    %v883 = vunpack.c.l.b16 %v849
    %v884 = vunpack.c.l.b16 %v850
    %v885 = vunpack.c.l.b16 %v851
    %v886 = vunpack.c.l.b16 %v852
    %v887 = vunpack.c.l.b16 %v853
    %v888 = vunpack.c.l.b16 %v854
    %v889 = vunpack.c.l.b16 %v855
    %v890 = vunpack.c.l.b16 %v856
    %v891 = vunpack.c.l.b16 %v857
    %v892 = vpack.c.b16 %v877, %v876
    %v893 = vpack.c.b16 %v879, %v878
    %v894 = vpack.c.b16 %v881, %v880
    %v895 = vpack.c.b16 %v883, %v882
    %v896 = vpack.c.b16 %v885, %v884
    %v897 = vpack.c.b16 %v887, %v886
    %v898 = vpack.c.b16 %v889, %v888
    %v899 = vpack.c.b16 %v891, %v890
    %908 = vmatpush.bf16.msra.mxu0 %v899
    %909 = vmatpush.bf16.msra.mxu0 %v898
    %910 = vmatpush.bf16.msra.mxu0 %v897
    %911 = vmatpush.bf16.msra.mxu0 %v896
    %912 = vmatpush.bf16.msra.mxu0 %v895
    %913 = vmatpush.bf16.msra.mxu0 %v894
    %914 = vmatpush.bf16.msra.mxu0 %v893
    %915 = vmatpush.bf16.msra.mxu0 %v892
    %916 = vmatmul.bf16.gmra.mxu0 %v840
    %v917 = vpop.f32.mrf.mxu0
    %v918 = vadd.f32 %v859, %v917
    %v919 = vpop.f32.mrf.mxu0
    %v920 = vadd.f32 %v859, %v919
    %921 = vdwg.mxu0
    %v922 = vmax.f32 %v918, 0.0
    %v923 = vmax.f32 %v920, 0.0
    %v924 = vpack.c.bf16 %v923, %v922
    %s925 = scalar_lea.vmem [#allocation7], 192
    %v926 = vld [vmem:[%s925] sm:$0xf]
    %v927 = vld [vmem:[%s925 + $0x4] sm:$0xf]
    %v928 = vld [vmem:[%s925 + $0x8] sm:$0xf]
    %v929 = vld [vmem:[%s925 + $0xc] sm:$0xf]
    %v930 = vld [vmem:[%s925 + $0x10] sm:$0xf]
    %v931 = vld [vmem:[%s925 + $0x14] sm:$0xf]
    %v932 = vld [vmem:[%s925 + $0x18] sm:$0xf]
    %v933 = vld [vmem:[%s925 + $0x1c] sm:$0xf]
    %v934 = vld [vmem:[%s925 + $0x20] sm:$0xf]
    %v935 = vld [vmem:[%s925 + $0x24] sm:$0xf]
    %v936 = vld [vmem:[%s925 + $0x28] sm:$0xf]
    %v937 = vld [vmem:[%s925 + $0x2c] sm:$0xf]
    %v938 = vld [vmem:[%s925 + $0x30] sm:$0xf]
    %v939 = vld [vmem:[%s925 + $0x34] sm:$0xf]
    %v940 = vld [vmem:[%s925 + $0x38] sm:$0xf]
    %v941 = vld [vmem:[%s925 + $0x3c] sm:$0xf]
    %v942 = vld [vmem:[#allocation8 + $0x4] sm:$0x1]
    %v943 = vperm.slane %v942, 0
    %v960 = vunpack.c.l.b16 %v926
    %v961 = vunpack.c.l.b16 %v927
    %v962 = vunpack.c.l.b16 %v928
    %v963 = vunpack.c.l.b16 %v929
    %v964 = vunpack.c.l.b16 %v930
    %v965 = vunpack.c.l.b16 %v931
    %v966 = vunpack.c.l.b16 %v932
    %v967 = vunpack.c.l.b16 %v933
    %v968 = vunpack.c.l.b16 %v934
    %v969 = vunpack.c.l.b16 %v935
    %v970 = vunpack.c.l.b16 %v936
    %v971 = vunpack.c.l.b16 %v937
    %v972 = vunpack.c.l.b16 %v938
    %v973 = vunpack.c.l.b16 %v939
    %v974 = vunpack.c.l.b16 %v940
    %v975 = vunpack.c.l.b16 %v941
    %v976 = vpack.c.b16 %v961, %v960
    %v977 = vpack.c.b16 %v963, %v962
    %v978 = vpack.c.b16 %v965, %v964
    %v979 = vpack.c.b16 %v967, %v966
    %v980 = vpack.c.b16 %v969, %v968
    %v981 = vpack.c.b16 %v971, %v970
    %v982 = vpack.c.b16 %v973, %v972
    %v983 = vpack.c.b16 %v975, %v974
    %992 = vmatpush.bf16.msra.mxu0 %v983
    %993 = vmatpush.bf16.msra.mxu0 %v982
    %994 = vmatpush.bf16.msra.mxu0 %v981
    %995 = vmatpush.bf16.msra.mxu0 %v980
    %996 = vmatpush.bf16.msra.mxu0 %v979
    %997 = vmatpush.bf16.msra.mxu0 %v978
    %998 = vmatpush.bf16.msra.mxu0 %v977
    %999 = vmatpush.bf16.msra.mxu0 %v976
    %1000 = vmatmul.bf16.gmra.mxu0 %v924
    %v1001 = vpop.f32.mrf.mxu0
    %v1002 = vadd.f32 %v943, %v1001
    %v1003 = vpop.f32.mrf.mxu0
    %v1004 = vadd.f32 %v943, %v1003
    %1005 = vdwg.mxu0
    %v1006 = vmax.f32 %v1002, 0.0
    %v1007 = vmax.f32 %v1004, 0.0
    %v1008 = vpack.c.bf16 %v1007, %v1006
    %s1009 = scalar_lea.vmem [#allocation7], 256
    %v1010 = vld [vmem:[%s1009] sm:$0xf]
    %v1011 = vld [vmem:[%s1009 + $0x4] sm:$0xf]
    %v1012 = vld [vmem:[%s1009 + $0x8] sm:$0xf]
    %v1013 = vld [vmem:[%s1009 + $0xc] sm:$0xf]
    %v1014 = vld [vmem:[%s1009 + $0x10] sm:$0xf]
    %v1015 = vld [vmem:[%s1009 + $0x14] sm:$0xf]
    %v1016 = vld [vmem:[%s1009 + $0x18] sm:$0xf]
    %v1017 = vld [vmem:[%s1009 + $0x1c] sm:$0xf]
    %v1018 = vld [vmem:[%s1009 + $0x20] sm:$0xf]
    %v1019 = vld [vmem:[%s1009 + $0x24] sm:$0xf]
    %v1020 = vld [vmem:[%s1009 + $0x28] sm:$0xf]
    %v1021 = vld [vmem:[%s1009 + $0x2c] sm:$0xf]
    %v1022 = vld [vmem:[%s1009 + $0x30] sm:$0xf]
    %v1023 = vld [vmem:[%s1009 + $0x34] sm:$0xf]
    %v1024 = vld [vmem:[%s1009 + $0x38] sm:$0xf]
    %v1025 = vld [vmem:[%s1009 + $0x3c] sm:$0xf]
    %v1026 = vld [vmem:[#allocation8 + $0x5] sm:$0x1]
    %v1027 = vperm.slane %v1026, 0
    %v1044 = vunpack.c.l.b16 %v1010
    %v1045 = vunpack.c.l.b16 %v1011
    %v1046 = vunpack.c.l.b16 %v1012
    %v1047 = vunpack.c.l.b16 %v1013
    %v1048 = vunpack.c.l.b16 %v1014
    %v1049 = vunpack.c.l.b16 %v1015
    %v1050 = vunpack.c.l.b16 %v1016
    %v1051 = vunpack.c.l.b16 %v1017
    %v1052 = vunpack.c.l.b16 %v1018
    %v1053 = vunpack.c.l.b16 %v1019
    %v1054 = vunpack.c.l.b16 %v1020
    %v1055 = vunpack.c.l.b16 %v1021
    %v1056 = vunpack.c.l.b16 %v1022
    %v1057 = vunpack.c.l.b16 %v1023
    %v1058 = vunpack.c.l.b16 %v1024
    %v1059 = vunpack.c.l.b16 %v1025
    %v1060 = vpack.c.b16 %v1045, %v1044
    %v1061 = vpack.c.b16 %v1047, %v1046
    %v1062 = vpack.c.b16 %v1049, %v1048
    %v1063 = vpack.c.b16 %v1051, %v1050
    %v1064 = vpack.c.b16 %v1053, %v1052
    %v1065 = vpack.c.b16 %v1055, %v1054
    %v1066 = vpack.c.b16 %v1057, %v1056
    %v1067 = vpack.c.b16 %v1059, %v1058
    %1076 = vmatpush.bf16.msra.mxu0 %v1067
    %1077 = vmatpush.bf16.msra.mxu0 %v1066
    %1078 = vmatpush.bf16.msra.mxu0 %v1065
    %1079 = vmatpush.bf16.msra.mxu0 %v1064
    %1080 = vmatpush.bf16.msra.mxu0 %v1063
    %1081 = vmatpush.bf16.msra.mxu0 %v1062
    %1082 = vmatpush.bf16.msra.mxu0 %v1061
    %1083 = vmatpush.bf16.msra.mxu0 %v1060
    %1084 = vmatmul.bf16.gmra.mxu0 %v1008
    %v1085 = vpop.f32.mrf.mxu0
    %v1086 = vadd.f32 %v1027, %v1085
    %v1087 = vpop.f32.mrf.mxu0
    %v1088 = vadd.f32 %v1027, %v1087
    %1089 = vdwg.mxu0
    %1090 = vst [vmem:[#allocation10] sm:$0xff] %v1086
    %1091 = vst [vmem:[#allocation10 + $0x8] sm:$0xff] %v1088
    // Predicated region
    $region34: #{tpu_custom_call.1} parent=1 // pred_check
      _
    $region35: #{tpu_custom_call.1} parent=1 // pred_check_branch
      %1093 = sbr.rel (0) target = $region37
    $region36: #{tpu_custom_call.1} parent=1 // pred_region
      %1095 = vsyncadd [#allocation4], 0
      %s1096 = sshll.u32 [#allocation10], 4
      %s1097 = int_to_ptr.vmem [resolvable:$true] %s1096
      %s1098 = sshll.u32 %s4, 4
      %s1099 = int_to_ptr.hbm [resolvable:$true] %s1098
      %1104 = dma.vmem_to_hbm [thread:$0]  %s1097, 256, %s1099, [#allocation4], 128, 128, 8
    $region37: #{tpu_custom_call.1} parent=1 // pred_fallthru
      _
    // Predicated region
    $region38: #{tpu_custom_call.1} parent=1 // pred_check
      _
    $region39: #{tpu_custom_call.1} parent=1 // pred_check_branch
      %1106 = sbr.rel (0) target = $region41
    $region40: #{tpu_custom_call.1} parent=1 // pred_region
      %1108 = dma.done [#allocation4], 256
    $region41: #{tpu_custom_call.1} parent=1 // pred_fallthru
      _
    %1109 = vsyncpa [#allocation3], 1
    %1110 = vsyncpa [#allocation6], 1
    %1111 = vsyncpa [#allocation9], 1
    %1112 = vsyncpa [#allocation4], 1

</llo_original>
